<compile_context>
chip_gen: v7x
topology: tpu7x:2x2x1
jax: 0.10.0
libtpu: 0.0.40
codegen_flags: <defaults>
</compile_context>

<pallas_src>
import functools
import math

import jax
import jax.numpy as jnp
from jax.experimental import pallas as pl
from jax.experimental.pallas import tpu as pltpu

_INV_SQRT2 = 0.7071067811865476
_TANH_C = math.sqrt(2.0 / math.pi)


def _gelu(h, approximate):
    if approximate:
        # tanh approximation (tanh runs on the EUP slot); numerics differ from erf.
        return 0.5 * h * (1.0 + jnp.tanh(_TANH_C * (h + 0.044715 * h * h * h)))
    return 0.5 * h * (1.0 + jax.lax.erf(h * _INV_SQRT2))


# ---------------------------------------------------------------------------
# Kernels
# ---------------------------------------------------------------------------
def _ffn_resident_kernel(x_ref, w1_ref, b1_ref, w2_ref, b2_ref, o_ref, *,
                         approximate=False):
    """Weights-resident path: full W1/W2 stay in VMEM; 1-D grid over token tiles."""
    h = jnp.dot(x_ref[...], w1_ref[...], preferred_element_type=jnp.float32)
    h = _gelu(h + b1_ref[...], approximate)
    # TODO(synk): training-mode dropout not emitted — eval-mode identity.
    y = jnp.dot(h.astype(w2_ref.dtype), w2_ref[...],
                preferred_element_type=jnp.float32)
    o_ref[...] = (y + b2_ref[...]).astype(o_ref.dtype)


def _ffn_tiled_kernel(x_ref, w1_ref, b1_ref, w2_ref, b2_ref, o_ref, *scratch,
                      approximate=False):
    """Tiled path: grid = (token tiles, d_ff tiles); d_ff axis is the reduction."""
    acc_ref = scratch[0] if scratch else o_ref  # f32 output accumulates in place
    ff = pl.program_id(1)

    h = jnp.dot(x_ref[...], w1_ref[...], preferred_element_type=jnp.float32)
    h = _gelu(h + b1_ref[...], approximate)
    part = jnp.dot(h.astype(w2_ref.dtype), w2_ref[...],
                   preferred_element_type=jnp.float32)

    @pl.when(ff == 0)
    def _():
        acc_ref[...] = part          # direct store: no zero-init read-modify-write

    @pl.when(ff > 0)
    def _():
        acc_ref[...] += part

    @pl.when(ff == pl.num_programs(1) - 1)
    def _():
        o_ref[...] = (acc_ref[...] + b2_ref[...]).astype(o_ref.dtype)


# ---------------------------------------------------------------------------
# Static (trace-time) tile / path selection
# ---------------------------------------------------------------------------
def _round_up(x, m):
    return ((x + m - 1) // m) * m


def _resident_vmem_bytes(tm, d_model, d_ff, out_isz):
    weights = 2 * d_model * d_ff * 2            # bf16 W1 + W2, single-buffered
    x_tiles = 2 * tm * d_model * 2              # double-buffered bf16 x
    o_tiles = 2 * tm * d_model * out_isz        # double-buffered output
    h_tmp = tm * d_ff * (4 + 2)                 # f32 h + bf16 cast
    bias = (d_ff + d_model) * 4
    return weights + x_tiles + o_tiles + h_tmp + bias


def _tiled_vmem_bytes(tm, tf, d_model, out_isz, use_scratch):
    w_tiles = 2 * 2 * d_model * tf * 2          # W1 + W2 slices, double-buffered
    x_tiles = 2 * tm * d_model * 2
    o_tiles = 2 * tm * d_model * out_isz
    acc = tm * d_model * 4 if use_scratch else 0
    h_tmp = tm * tf * (4 + 2)
    bias = 2 * (tf + d_model) * 4
    return w_tiles + x_tiles + o_tiles + acc + h_tmp + bias


def _select_plan(N, d_model, d_ff, out_isz, force_tiled=False):
    try:
        vmem_cap = int(getattr(pltpu.get_tpu_info(), "vmem_capacity_bytes",
                               64 << 20))
    except Exception:  # non-TPU tracing fallback: assume the smallest (v7x) VMEM
        vmem_cap = 64 << 20
    small_vmem = vmem_cap < (96 << 20)          # v7x-class: 64 MiB / TC, 2 TCs
    tm_target = 512 if small_vmem else 768      # ~ peak_flops / HBM_BW per gen
    budget = vmem_cap // 2                      # leave pipelining headroom
    vmem_limit = min(int(vmem_cap * 0.85), 100 << 20)

    n8 = _round_up(max(N, 1), 8)

    # ---- token-row tile: padding-aware candidate choice ---------------------
    if n8 <= 256:
        tm = n8
    else:
        cands = [c for c in (1024, 896, 768, 640, 512, 384, 256, 128)
                 if c <= tm_target]
        ok = [c for c in cands if (_round_up(N, c) - N) * 16 <= N]  # <~6% waste
        if small_vmem:              # prefer >=2 token tiles so both TCs get work
            ok2 = [c for c in ok if _round_up(N, c) // c >= 2]
            ok = ok2 or ok
        tm = max(ok) if ok else min(cands, key=lambda c: (_round_up(N, c) - N, -c))

    # ---- weights-resident fast path (weights DMA'd exactly once) ------------
    if not force_tiled:
        for cand in sorted({tm, 512, 384, 256, 128}, reverse=True):
            if cand > tm:
                continue
            if _resident_vmem_bytes(cand, d_model, d_ff, out_isz) <= budget:
                tm = cand
                return dict(resident=True, tm=tm, tf=d_ff, d_ff_pad=d_ff,
                            n_pad=_round_up(max(N, 1), tm),
                            vmem_limit=vmem_limit)

    # ---- tiled reduction path ------------------------------------------------
    use_scratch = out_isz != 4
    tf = None
    for cand in (2048, 1536, 1024, 768, 512):
        if cand <= d_ff and _tiled_vmem_bytes(tm, cand, d_model, out_isz,
                                              use_scratch) <= budget:
            tf = cand
            break
    if tf is None:
        tf = min(512, _round_up(d_ff, 128))
        # VMEM still tight: trim the token tile, not tf (keeps acc RMW amortized)
        while tm > 128 and _tiled_vmem_bytes(tm, tf, d_model, out_isz,
                                             use_scratch) > budget:
            tm -= 128
        tm = max(tm, 8)
    d_ff_pad = _round_up(d_ff, tf)
    return dict(resident=False, tm=tm, tf=tf, d_ff_pad=d_ff_pad,
                n_pad=_round_up(max(N, 1), tm), vmem_limit=vmem_limit)


# ---------------------------------------------------------------------------
# Wrapper
# ---------------------------------------------------------------------------
@functools.partial(jax.jit, static_argnames=("gelu_approximate", "force_tiled"))
def feed_forward(x, w1, b1, w2, b2, *, gelu_approximate=False, force_tiled=False):
    """x: (..., d_model) -> (..., d_model).  W1: (d_model, d_ff), W2: (d_ff, d_model)."""
    orig_shape = x.shape
    d_model = orig_shape[-1]
    d_ff = w1.shape[1]
    N = 1
    for s in orig_shape[:-1]:
        N *= s
    out_dtype = x.dtype
    out_isz = jnp.dtype(out_dtype).itemsize
    cdt = jnp.bfloat16  # MXU operand dtype; accumulation stays f32

    plan = _select_plan(N, d_model, d_ff, out_isz, force_tiled)
    tm, tf = plan["tm"], plan["tf"]
    d_ff_pad, n_pad = plan["d_ff_pad"], plan["n_pad"]
    resident = plan["resident"]

    # ---- operand prep --------------------------------------------------------
    x2 = x.reshape(N, d_model)
    if n_pad != N:
        x2 = jnp.pad(x2, ((0, n_pad - N), (0, 0)))
    x2 = x2.astype(cdt)
    w1c = w1.astype(cdt)
    w2c = w2.astype(cdt)
    b1c = b1.reshape(1, d_ff).astype(jnp.float32)
    b2c = b2.reshape(1, d_model).astype(jnp.float32)
    if d_ff_pad != d_ff:  # zero-padded d_ff columns contribute exactly 0
        w1c = jnp.pad(w1c, ((0, 0), (0, d_ff_pad - d_ff)))
        b1c = jnp.pad(b1c, ((0, 0), (0, d_ff_pad - d_ff)))
        w2c = jnp.pad(w2c, ((0, d_ff_pad - d_ff), (0, 0)))

    # ---- grid / specs ---------------------------------------------------------
    if resident:
        grid = (n_pad // tm,)
        in_specs = [
            pl.BlockSpec((tm, d_model), lambda i: (i, 0)),         # x tile
            pl.BlockSpec((d_model, d_ff_pad), lambda i: (0, 0)),   # W1 (resident)
            pl.BlockSpec((1, d_ff_pad), lambda i: (0, 0)),         # b1
            pl.BlockSpec((d_ff_pad, d_model), lambda i: (0, 0)),   # W2 (resident)
            pl.BlockSpec((1, d_model), lambda i: (0, 0)),          # b2
        ]
        out_specs = pl.BlockSpec((tm, d_model), lambda i: (i, 0))
        scratch_shapes = []
        dims = ("parallel",)
        kernel = functools.partial(_ffn_resident_kernel,
                                   approximate=gelu_approximate)
        weight_passes = 1
    else:
        grid = (n_pad // tm, d_ff_pad // tf)
        in_specs = [
            pl.BlockSpec((tm, d_model), lambda i, f: (i, 0)),      # x tile
            pl.BlockSpec((d_model, tf), lambda i, f: (0, f)),      # W1 slice
            pl.BlockSpec((1, tf), lambda i, f: (0, f)),            # b1 slice
            pl.BlockSpec((tf, d_model), lambda i, f: (f, 0)),      # W2 slice
            pl.BlockSpec((1, d_model), lambda i, f: (0, 0)),       # b2
        ]
        out_specs = pl.BlockSpec((tm, d_model), lambda i, f: (i, 0))
        use_scratch = out_isz != 4  # f32 output accumulates directly in o_ref
        scratch_shapes = ([pltpu.VMEM((tm, d_model), jnp.float32)]
                          if use_scratch else [])
        dims = ("parallel", "arbitrary")
        kernel = functools.partial(_ffn_tiled_kernel,
                                   approximate=gelu_approximate)
        weight_passes = n_pad // tm  # weights re-streamed per token tile

    cost = pl.CostEstimate(
        flops=4 * n_pad * d_model * d_ff_pad,
        transcendentals=n_pad * d_ff_pad,
        bytes_accessed=(n_pad * d_model * 2                        # x (bf16)
                        + weight_passes * 2 * d_model * d_ff_pad * 2  # W1+W2
                        + (d_ff_pad + d_model) * 4                 # biases
                        + n_pad * d_model * out_isz),              # output
    )

    out = pl.pallas_call(
        kernel,
        out_shape=jax.ShapeDtypeStruct((n_pad, d_model), out_dtype),
        grid_spec=pltpu.PrefetchScalarGridSpec(
            num_scalar_prefetch=0,
            grid=grid,
            in_specs=in_specs,
            out_specs=out_specs,
            scratch_shapes=scratch_shapes,
        ),
        compiler_params=pltpu.CompilerParams(
            dimension_semantics=dims,
            vmem_limit_bytes=plan["vmem_limit"],
        ),
        cost_estimate=cost,
    )(x2, w1c, b1c, w2c, b2c)

    return out[:N].reshape(orig_shape)


def _ref_feed_forward(x, w1, b1, w2, b2):
    """Pure-JAX reference with the same bf16 operand casts / f32 accumulation."""
    f32 = jnp.float32
    xb = x.astype(jnp.bfloat16).astype(f32)
    w1b = w1.astype(jnp.bfloat16).astype(f32)
    w2b = w2.astype(jnp.bfloat16).astype(f32)
    h = jnp.dot(xb, w1b, precision=jax.lax.Precision.HIGHEST) + b1.reshape(1, -1).astype(f32)
    h = 0.5 * h * (1.0 + jax.lax.erf(h * _INV_SQRT2))
    hb = h.astype(jnp.bfloat16).astype(f32)
    y = jnp.dot(hb, w2b, precision=jax.lax.Precision.HIGHEST) + b2.reshape(1, -1).astype(f32)
    return y.astype(x.dtype)


if __name__ == "__main__":
    key = jax.random.PRNGKey(0)

    # ---- test 1: small GPT-2-shaped FFN (weights-resident path) -------------
    B, S, d_model, d_ff = 2, 8, 32, 128
    kx, kw1, kb1, kw2, kb2 = jax.random.split(key, 5)
    bound1 = 1.0 / math.sqrt(d_model)
    bound2 = 1.0 / math.sqrt(d_ff)
    x = jax.random.normal(kx, (B, S, d_model), dtype=jnp.float32)
    w1 = jax.random.uniform(kw1, (d_model, d_ff), jnp.float32, -bound1, bound1)
    b1 = jax.random.uniform(kb1, (d_ff,), jnp.float32, -bound1, bound1)
    w2 = jax.random.uniform(kw2, (d_ff, d_model), jnp.float32, -bound2, bound2)
    b2 = jax.random.uniform(kb2, (d_model,), jnp.float32, -bound2, bound2)

    y = feed_forward(x, w1, b1, w2, b2)
    jax.block_until_ready(y)
    y_ref = _ref_feed_forward(x.reshape(-1, d_model), w1, b1, w2, b2)
    y_ref = y_ref.reshape(B, S, d_model)
    assert y.shape == (B, S, d_model), y.shape
    err = float(jnp.max(jnp.abs(y - y_ref)))
    assert err < 2e-2, err

    # ---- test 2: force the tiled (d_ff reduction) path, f32 in-place acc ----
    d_ff2 = 4096
    kw1b, kb1b, kw2b, kb2b = jax.random.split(jax.random.PRNGKey(1), 4)
    bound2b = 1.0 / math.sqrt(d_ff2)
    w1b_ = jax.random.uniform(kw1b, (d_model, d_ff2), jnp.float32, -bound1, bound1)
    b1b_ = jax.random.uniform(kb1b, (d_ff2,), jnp.float32, -bound1, bound1)
    w2b_ = jax.random.uniform(kw2b, (d_ff2, d_model), jnp.float32, -bound2b, bound2b)
    b2b_ = jax.random.uniform(kb2b, (d_model,), jnp.float32, -bound2b, bound2b)

    y2 = feed_forward(x, w1b_, b1b_, w2b_, b2b_, force_tiled=True)
    jax.block_until_ready(y2)
    y2_ref = _ref_feed_forward(x.reshape(-1, d_model), w1b_, b1b_, w2b_, b2b_)
    y2_ref = y2_ref.reshape(B, S, d_model)
    err2 = float(jnp.max(jnp.abs(y2 - y2_ref)))
    assert err2 < 2e-2, err2

    # ---- test 3: tiled path with bf16 output (f32 VMEM accumulator scratch) --
    xb16 = x.astype(jnp.bfloat16)
    y3 = feed_forward(xb16, w1b_, b1b_, w2b_, b2b_, force_tiled=True)
    jax.block_until_ready(y3)
    y3_ref = _ref_feed_forward(xb16.reshape(-1, d_model), w1b_, b1b_, w2b_, b2b_)
    y3_ref = y3_ref.reshape(B, S, d_model)
    err3 = float(jnp.max(jnp.abs(y3.astype(jnp.float32) - y3_ref.astype(jnp.float32))))
    assert err3 < 3e-2, err3

    print("KERNEL_OK")
</pallas_src>

<mosaic_0001>
module attributes {stable_mosaic.version = 11 : i64} {
  func.func @_ffn_resident_kernel(%arg0: i32, %arg1: memref<16x32xbf16, #tpu.memory_space<vmem>>, %arg2: memref<32x128xbf16, #tpu.memory_space<vmem>>, %arg3: memref<1x128xf32, #tpu.memory_space<vmem>>, %arg4: memref<128x32xbf16, #tpu.memory_space<vmem>>, %arg5: memref<1x32xf32, #tpu.memory_space<vmem>>, %arg6: memref<16x32xf32, #tpu.memory_space<vmem>>) attributes {dimension_semantics = [#tpu.dimension_semantics<parallel>], iteration_bounds = array<i64: 1>, scalar_prefetch = 0 : i64, scratch_operands = 0 : i64, tpu.core_type = #tpu.core_type<tc>, window_params = [{transform_indices = @transform_0, window_bounds = array<i64: 16, 32>}, {pipeline_mode = #tpu.pipeline_mode<synchronous>, transform_indices = @transform_1, window_bounds = array<i64: 32, 128>}, {pipeline_mode = #tpu.pipeline_mode<synchronous>, transform_indices = @transform_2, window_bounds = array<i64: 1, 128>}, {pipeline_mode = #tpu.pipeline_mode<synchronous>, transform_indices = @transform_3, window_bounds = array<i64: 128, 32>}, {pipeline_mode = #tpu.pipeline_mode<synchronous>, transform_indices = @transform_4, window_bounds = array<i64: 1, 32>}, {transform_indices = @transform_5, window_bounds = array<i64: 16, 32>}]} {
    %c0 = arith.constant 0 : index
    %c0_0 = arith.constant 0 : index
    %0 = vector.load %arg1[%c0, %c0_0] : memref<16x32xbf16, #tpu.memory_space<vmem>>, vector<16x32xbf16>
    %c0_1 = arith.constant 0 : index
    %c0_2 = arith.constant 0 : index
    %1 = vector.load %arg2[%c0_1, %c0_2] : memref<32x128xbf16, #tpu.memory_space<vmem>>, vector<32x128xbf16>
    %cst = arith.constant dense<0.000000e+00> : vector<16x128xf32>
    %2 = tpu.matmul %0, %1, %cst {dimension_numbers = #tpu.dot_dimension_numbers<[1], [0], [0], [1], [0, 0, 1, 1], [], []>} : vector<16x32xbf16>, vector<32x128xbf16>, vector<16x128xf32> -> vector<16x128xf32>
    %c0_3 = arith.constant 0 : index
    %c0_4 = arith.constant 0 : index
    %3 = vector.load %arg3[%c0_3, %c0_4] : memref<1x128xf32, #tpu.memory_space<vmem>>, vector<1x128xf32>
    %4 = vector.broadcast %3 : vector<1x128xf32> to vector<16x128xf32>
    %5 = arith.addf %2, %4 : vector<16x128xf32>
    %cst_5 = arith.constant 5.000000e-01 : f32
    %6 = vector.broadcast %cst_5 : f32 to vector<16x128xf32>
    %7 = arith.mulf %6, %5 : vector<16x128xf32>
    %cst_6 = arith.constant 0.707106769 : f32
    %8 = vector.broadcast %cst_6 : f32 to vector<16x128xf32>
    %9 = arith.mulf %5, %8 : vector<16x128xf32>
    %10 = math.erf %9 : vector<16x128xf32>
    %cst_7 = arith.constant 1.000000e+00 : f32
    %11 = vector.broadcast %cst_7 : f32 to vector<16x128xf32>
    %12 = arith.addf %11, %10 : vector<16x128xf32>
    %13 = arith.mulf %7, %12 : vector<16x128xf32>
    %14 = arith.truncf %13 : vector<16x128xf32> to vector<16x128xbf16>
    %c0_8 = arith.constant 0 : index
    %c0_9 = arith.constant 0 : index
    %15 = vector.load %arg4[%c0_8, %c0_9] : memref<128x32xbf16, #tpu.memory_space<vmem>>, vector<128x32xbf16>
    %cst_10 = arith.constant dense<0.000000e+00> : vector<16x32xf32>
    %16 = tpu.matmul %14, %15, %cst_10 {dimension_numbers = #tpu.dot_dimension_numbers<[1], [0], [0], [1], [0, 0, 1, 1], [], []>} : vector<16x128xbf16>, vector<128x32xbf16>, vector<16x32xf32> -> vector<16x32xf32>
    %c0_11 = arith.constant 0 : index
    %c0_12 = arith.constant 0 : index
    %17 = vector.load %arg5[%c0_11, %c0_12] : memref<1x32xf32, #tpu.memory_space<vmem>>, vector<1x32xf32>
    %18 = vector.broadcast %17 : vector<1x32xf32> to vector<16x32xf32>
    %19 = arith.addf %16, %18 : vector<16x32xf32>
    %c0_13 = arith.constant 0 : index
    %c0_14 = arith.constant 0 : index
    %20 = vector.load %arg6[%c0_13, %c0_14] : memref<16x32xf32, #tpu.memory_space<vmem>>, vector<16x32xf32>
    tpu.vector_store %arg6[%c0_13, %c0_14], %19 {strides = array<i32>} : memref<16x32xf32, #tpu.memory_space<vmem>>, vector<16x32xf32>,
    return
  }
  func.func @transform_0(%arg0: i32) -> (i32, i32) {
    %c0_i32 = arith.constant 0 : i32
    %c0_i32_0 = arith.constant 0 : i32
    return %arg0, %c0_i32 : i32, i32
  }
  func.func @transform_1(%arg0: i32) -> (i32, i32) {
    %c0_i32 = arith.constant 0 : i32
    %c0_i32_0 = arith.constant 0 : i32
    %c0_i32_1 = arith.constant 0 : i32
    return %c0_i32, %c0_i32_0 : i32, i32
  }
  func.func @transform_2(%arg0: i32) -> (i32, i32) {
    %c0_i32 = arith.constant 0 : i32
    %c0_i32_0 = arith.constant 0 : i32
    %c0_i32_1 = arith.constant 0 : i32
    return %c0_i32, %c0_i32_0 : i32, i32
  }
  func.func @transform_3(%arg0: i32) -> (i32, i32) {
    %c0_i32 = arith.constant 0 : i32
    %c0_i32_0 = arith.constant 0 : i32
    %c0_i32_1 = arith.constant 0 : i32
    return %c0_i32, %c0_i32_0 : i32, i32
  }
  func.func @transform_4(%arg0: i32) -> (i32, i32) {
    %c0_i32 = arith.constant 0 : i32
    %c0_i32_0 = arith.constant 0 : i32
    %c0_i32_1 = arith.constant 0 : i32
    return %c0_i32, %c0_i32_0 : i32, i32
  }
  func.func @transform_5(%arg0: i32) -> (i32, i32) {
    %c0_i32 = arith.constant 0 : i32
    %c0_i32_0 = arith.constant 0 : i32
    return %arg0, %c0_i32 : i32, i32
  }
}

</mosaic_0001>

<llo_original>
// kernel: feed_forward.1
$region0: #{feed_forward.1}
  #allocation0 [shape = 'u32[]', space=smem, size = 0x4, offset = 0x4, fixed_abs, tag = 'smem constant byte address 0x4 - core index']
  #allocation1 [shape = 'u32[144,128]{1,0:T(1,128)}', space=vmem, size = 0x12000, scoped, tag = 'internal scratch']
  %s0 = inlined_call_operand.vmem [shape: bf16[16,32], index: 0, kind: input, shape index: {}]
  %s1 = inlined_call_operand.vmem [shape: bf16[32,128], index: 1, kind: input, shape index: {}]
  %s2 = inlined_call_operand.vmem [shape: f32[1,128], index: 2, kind: input, shape index: {}]
  %s3 = inlined_call_operand.vmem [shape: bf16[128,32], index: 3, kind: input, shape index: {}]
  %s4 = inlined_call_operand.vmem [shape: f32[1,32], index: 4, kind: input, shape index: {}]
  %s5 = inlined_call_operand.hbm [shape: f32[16,32], index: 5, kind: output, shape index: {}]
  %s6 = sld [smem:[#allocation0]]
  $region30: #{feed_forward.1} parent=0
    _
  %s8 = ssub.s32 1, %s6
  %s9 = scalar_select 0, %s8, %s6
  $region1: #{feed_forward.1} parent=0
    #allocation2 [shape = 'u8[8192]{0}', space=vmem, size = 0x2000, scoped, tag = 'output window, operand 0, single buffered']
    #allocation3 [shape = 's32[1]{0}', space=sflag, size = 0x4, scoped, tag = 'scoped memory for feed_forward.1']
    %10 = vsyncpa [#allocation3], 0
    // Predicated region
    $region2: #{feed_forward.1} parent=1 // pred_check
      _
    $region3: #{feed_forward.1} parent=1 // pred_check_branch
      %12 = sbr.rel (0) target = $region5
    $region4: #{feed_forward.1} parent=1 // pred_region
      _
    $region5: #{feed_forward.1} parent=1 // pred_fallthru
      _
    // Predicated region
    $region6: #{feed_forward.1} parent=1 // pred_check
      _
    $region7: #{feed_forward.1} parent=1 // pred_check_branch
      %14 = sbr.rel (0) target = $region9
    $region8: #{feed_forward.1} parent=1 // pred_region
      _
    $region9: #{feed_forward.1} parent=1 // pred_fallthru
      _
    // Predicated region
    $region10: #{feed_forward.1} parent=1 // pred_check
      _
    $region11: #{feed_forward.1} parent=1 // pred_check_branch
      %16 = sbr.rel (0) target = $region13
    $region12: #{feed_forward.1} parent=1 // pred_region
      _
    $region13: #{feed_forward.1} parent=1 // pred_fallthru
      _
    // Predicated region
    $region14: #{feed_forward.1} parent=1 // pred_check
      _
    $region15: #{feed_forward.1} parent=1 // pred_check_branch
      %18 = sbr.rel (0) target = $region17
    $region16: #{feed_forward.1} parent=1 // pred_region
      _
    $region17: #{feed_forward.1} parent=1 // pred_fallthru
      _
    // Predicated region
    $region18: #{feed_forward.1} parent=1 // pred_check
      _
    $region19: #{feed_forward.1} parent=1 // pred_check_branch
      %20 = sbr.rel (0) target = $region21
    $region20: #{feed_forward.1} parent=1 // pred_region
      _
    $region21: #{feed_forward.1} parent=1 // pred_fallthru
      _
    %v22 = vld [vmem:[%s0] sm:$0xf]
    %v23 = vld [vmem:[%s0 + $0x4] sm:$0xf]
    %v24 = vld [vmem:[%s1] sm:$0xf]
    %v25 = vld [vmem:[%s1 + $0x4] sm:$0xf]
    %v26 = vld [vmem:[%s1 + $0x8] sm:$0xf]
    %v27 = vld [vmem:[%s1 + $0xc] sm:$0xf]
    %v28 = vld [vmem:[%s2] sm:$0x1]
    %v30 = vlaneseq
    %v31 = vshrl.u32 %v30, 7
    %v32 = vsub.s32 0, %v31
    %v33 = vrot.slane %v28, %v32
    %v37 = vunpack.c.l.b16 %v22
    %v38 = vunpack.c.l.b16 %v23
    %v39 = vpack.c.b16 %v38, %v37
    %v44 = vunpack.c.l.b16 %v24
    %v45 = vunpack.c.l.b16 %v25
    %v46 = vunpack.c.l.b16 %v26
    %v47 = vunpack.c.l.b16 %v27
    %v48 = vpack.c.b16 %v45, %v44
    %v49 = vpack.c.b16 %v47, %v46
    %vm52 = vcmask 261120
    %v54 = vsel %vm52, %v39, 0
    %56 = vmatprep.subr.bf16.mxu0 0
    %57 = vmatpush1.bf16.msra.mxu0 %v48
    %58 = vmatprep.subr.bf16.mxu0 0
    %59 = vmatpush1.bf16.msra.mxu0 %v49
    %60 = vmatprep.subr.bf16.mxu0 0
    %61 = vmatpush1.bf16.msra.mxu0 0
    %62 = vmatprep.subr.bf16.mxu0 0
    %63 = vmatpush1.bf16.msra.mxu0 0
    %64 = vmatprep.subr.bf16.mxu0 0
    %65 = vmatpush1.bf16.msra.mxu0 0
    %66 = vmatprep.subr.bf16.mxu0 0
    %67 = vmatpush1.bf16.msra.mxu0 0
    %68 = vmatprep.subr.bf16.mxu0 0
    %69 = vmatpush1.bf16.msra.mxu0 0
    %70 = vmatprep.subr.bf16.mxu0 0
    %71 = vmatpush1.bf16.msra.mxu0 0
    %72 = vmatprep.subr.bf16.mxu0 0
    %73 = vmatpush1.bf16.msra.mxu0 0
    %74 = vmatprep.subr.bf16.mxu0 0
    %75 = vmatpush1.bf16.msra.mxu0 0
    %76 = vmatprep.subr.bf16.mxu0 0
    %77 = vmatpush1.bf16.msra.mxu0 0
    %78 = vmatprep.subr.bf16.mxu0 0
    %79 = vmatpush1.bf16.msra.mxu0 0
    %80 = vmatprep.subr.bf16.mxu0 0
    %81 = vmatpush1.bf16.msra.mxu0 0
    %82 = vmatprep.subr.bf16.mxu0 0
    %83 = vmatpush1.bf16.msra.mxu0 0
    %84 = vmatprep.subr.bf16.mxu0 0
    %85 = vmatpush1.bf16.msra.mxu0 0
    %86 = vmatprep.subr.bf16.mxu0 0
    %87 = vmatpush1.bf16.msra.mxu0 0
    %88 = vmatprep.mubr.bf16.mxu0 0
    %89 = vmatmul.mubr.bf16.gmra.mrb[0].mxu0 %v54
    %v90 = vpop.f32.mrb[0].mxu0
    %v91 = vadd.f32 %v33, %v90
    %v92 = vpop.f32.mrb[0].mxu0
    %v93 = vpop.f32.mrb[0].mxu0
    %v94 = vadd.f32 %v33, %v93
    %v95 = vpop.f32.mrb[0].mxu0
    %96 = vdwg.mxu0
    %v97 = vmul.f32 %v91, 0.5
    %v98 = vmul.f32 %v94, 0.5
    %v99 = vmul.f32 %v91, 0.70710677
    %v100 = vmul.f32 %v94, 0.70710677
    %v101 = verf.f32.pop %v99
    %v102 = verf.f32.pop %v100
    %v103 = vadd.f32 %v101, 1.0
    %v104 = vadd.f32 %v102, 1.0
    %v105 = vmul.f32 %v97, %v103
    %v106 = vmul.f32 %v98, %v104
    %v107 = vpack.c.bf16 %v106, %v105
    %v108 = vld [vmem:[%s3] sm:$0xf]
    %v109 = vld [vmem:[%s3 + $0x4] sm:$0xf]
    %v110 = vld [vmem:[%s3 + $0x8] sm:$0xf]
    %v111 = vld [vmem:[%s3 + $0xc] sm:$0xf]
    %v112 = vld [vmem:[%s3 + $0x10] sm:$0xf]
    %v113 = vld [vmem:[%s3 + $0x14] sm:$0xf]
    %v114 = vld [vmem:[%s3 + $0x18] sm:$0xf]
    %v115 = vld [vmem:[%s3 + $0x1c] sm:$0xf]
    %v116 = vld [vmem:[%s3 + $0x20] sm:$0xf]
    %v117 = vld [vmem:[%s3 + $0x24] sm:$0xf]
    %v118 = vld [vmem:[%s3 + $0x28] sm:$0xf]
    %v119 = vld [vmem:[%s3 + $0x2c] sm:$0xf]
    %v120 = vld [vmem:[%s3 + $0x30] sm:$0xf]
    %v121 = vld [vmem:[%s3 + $0x34] sm:$0xf]
    %v122 = vld [vmem:[%s3 + $0x38] sm:$0xf]
    %v123 = vld [vmem:[%s3 + $0x3c] sm:$0xf]
    %v124 = vld [vmem:[%s4] sm:$0x1]
    %v126 = vlaneseq
    %v127 = vshrl.u32 %v126, 7
    %v128 = vsub.s32 0, %v127
    %v129 = vrot.slane %v124, %v128
    %v147 = vunpack.c.l.b16 %v108
    %v148 = vunpack.c.l.b16 %v109
    %v149 = vunpack.c.l.b16 %v110
    %v150 = vunpack.c.l.b16 %v111
    %v151 = vunpack.c.l.b16 %v112
    %v152 = vunpack.c.l.b16 %v113
    %v153 = vunpack.c.l.b16 %v114
    %v154 = vunpack.c.l.b16 %v115
    %v155 = vunpack.c.l.b16 %v116
    %v156 = vunpack.c.l.b16 %v117
    %v157 = vunpack.c.l.b16 %v118
    %v158 = vunpack.c.l.b16 %v119
    %v159 = vunpack.c.l.b16 %v120
    %v160 = vunpack.c.l.b16 %v121
    %v161 = vunpack.c.l.b16 %v122
    %v162 = vunpack.c.l.b16 %v123
    %v163 = vpack.c.b16 %v148, %v147
    %v164 = vpack.c.b16 %v150, %v149
    %v165 = vpack.c.b16 %v152, %v151
    %v166 = vpack.c.b16 %v154, %v153
    %v167 = vpack.c.b16 %v156, %v155
    %v168 = vpack.c.b16 %v158, %v157
    %v169 = vpack.c.b16 %v160, %v159
    %v170 = vpack.c.b16 %v162, %v161
    %179 = vmatprep.subr.bf16.mxu0 0
    %180 = vmatpush1.bf16.msra.mxu0 %v163
    %181 = vmatprep.subr.bf16.mxu0 0
    %182 = vmatpush1.bf16.msra.mxu0 %v164
    %183 = vmatprep.subr.bf16.mxu0 0
    %184 = vmatpush1.bf16.msra.mxu0 %v165
    %185 = vmatprep.subr.bf16.mxu0 0
    %186 = vmatpush1.bf16.msra.mxu0 %v166
    %187 = vmatprep.subr.bf16.mxu0 0
    %188 = vmatpush1.bf16.msra.mxu0 %v167
    %189 = vmatprep.subr.bf16.mxu0 0
    %190 = vmatpush1.bf16.msra.mxu0 %v168
    %191 = vmatprep.subr.bf16.mxu0 0
    %192 = vmatpush1.bf16.msra.mxu0 %v169
    %193 = vmatprep.subr.bf16.mxu0 0
    %194 = vmatpush1.bf16.msra.mxu0 %v170
    %195 = vmatprep.subr.bf16.mxu0 0
    %196 = vmatpush1.bf16.msra.mxu0 0
    %197 = vmatprep.subr.bf16.mxu0 0
    %198 = vmatpush1.bf16.msra.mxu0 0
    %199 = vmatprep.subr.bf16.mxu0 0
    %200 = vmatpush1.bf16.msra.mxu0 0
    %201 = vmatprep.subr.bf16.mxu0 0
    %202 = vmatpush1.bf16.msra.mxu0 0
    %203 = vmatprep.subr.bf16.mxu0 0
    %204 = vmatpush1.bf16.msra.mxu0 0
    %205 = vmatprep.subr.bf16.mxu0 0
    %206 = vmatpush1.bf16.msra.mxu0 0
    %207 = vmatprep.subr.bf16.mxu0 0
    %208 = vmatpush1.bf16.msra.mxu0 0
    %209 = vmatprep.subr.bf16.mxu0 0
    %210 = vmatpush1.bf16.msra.mxu0 0
    %211 = vmatprep.mubr.bf16.mxu0 0
    %212 = vmatmul.mubr.bf16.gmra.mrb[0].mxu0 %v107
    %v213 = vpop.f32.mrb[0].mxu0
    %v214 = vadd.f32 %v129, %v213
    %v215 = vpop.f32.mrb[0].mxu0
    %v216 = vpop.f32.mrb[0].mxu0
    %v217 = vadd.f32 %v129, %v216
    %v218 = vpop.f32.mrb[0].mxu0
    %219 = vdwg.mxu0
    %220 = vst.msk [vmem:[#allocation2] sm:$0xff] %vm52, %v214
    %221 = vst.msk [vmem:[#allocation2 + $0x8] sm:$0xff] %vm52, %v217
    // Predicated region
    $region22: #{feed_forward.1} parent=1 // pred_check
      _
    $region23: #{feed_forward.1} parent=1 // pred_check_branch
      %223 = sbr.rel (0) target = $region25
    $region24: #{feed_forward.1} parent=1 // pred_region
      %s225 = ssub.s32 256, 256
      %226 = vsyncadd [#allocation3], %s225
      %s227 = sshll.u32 [#allocation2], 4
      %s228 = int_to_ptr.vmem [resolvable:$true] %s227
      %233 = dma.vmem_to_hbm [thread:$0]  %s228, 256, %s5, [#allocation3], 128, 128, 8
    $region25: #{feed_forward.1} parent=1 // pred_fallthru
      _
    // Predicated region
    $region26: #{feed_forward.1} parent=1 // pred_check
      _
    $region27: #{feed_forward.1} parent=1 // pred_check_branch
      %235 = sbr.rel (0) target = $region29
    $region28: #{feed_forward.1} parent=1 // pred_region
      %236 = dma.done [#allocation3], 256
    $region29: #{feed_forward.1} parent=1 // pred_fallthru
      _
    %237 = vsyncpa [#allocation3], 1

</llo_original>
